<compile_context>
chip_gen: v7x
topology: tpu7x:2x2x1
jax: 0.10.0
libtpu: 0.0.40
codegen_flags: <defaults>
</compile_context>

<pallas_src>
import jax
import jax.numpy as jnp
from jax.experimental import pallas as pl
from jax.experimental.pallas import tpu as pltpu
import numpy as np


def lstm_maxpool_kernel(x_ref, wih_ref, whh_ref, b_ref, o_ref):
    # x_ref:   (S, B, H)   embedded tokens, time-major, f32 (B padded to 8-sublane mult.)
    # wih_ref: (H, 4H)     input->hidden weights, pre-transposed, gates concatenated (i,f,g,o)
    # whh_ref: (H, 4H)     hidden->hidden weights, pre-transposed, gates concatenated
    # b_ref:   (1, 4H)     combined bias (b_ih + b_hh)
    # o_ref:   (B, H)      max over time of LSTM hidden state
    S, B, H = x_ref.shape
    G = 4 * H

    # ---- hoisted, loop-invariant input projection (+ bias, added once) ----
    # (S*B, H) @ (H, 4H) -> (S*B, 4H): one big lane-dense matmul instead of S tiny ones.
    x_all = x_ref[...].reshape(S * B, H)
    gates_x = (jnp.dot(x_all, wih_ref[...], preferred_element_type=jnp.float32)
               + b_ref[...]).reshape(S, B, G)

    whh = whh_ref[...]  # load once, reuse every step

    h = jnp.zeros((B, H), jnp.float32)
    c = jnp.zeros((B, H), jnp.float32)
    m = jnp.full((B, H), -jnp.inf, jnp.float32)  # matches torch max_pool1d over full length
                                                 # (would propagate -inf only if S == 0)

    # ---- recurrence: fully unrolled (S is small & static) ----
    for t in range(S):
        # single fused-gate matmul per step: (B, H) @ (H, 4H) -> (B, 4H) lane-dense
        gates = gates_x[t] + jnp.dot(h, whh, preferred_element_type=jnp.float32)
        i_g = jax.nn.sigmoid(gates[:, 0 * H:1 * H])
        f_g = jax.nn.sigmoid(gates[:, 1 * H:2 * H])
        g_g = jnp.tanh(gates[:, 2 * H:3 * H])
        o_g = jax.nn.sigmoid(gates[:, 3 * H:4 * H])
        c = f_g * c + i_g * g_g
        h = o_g * jnp.tanh(c)
        m = jnp.maximum(m, h)

    o_ref[...] = m


def sentence_encoder_forward(tokens, params):
    """tokens: (B, S) int32 token ids. Returns (B, H) float32 (squeezed like the torch module)."""
    emb = params["embedding"]            # (V+1, H), row 0 is zeros (padding_idx=0)
    w_ih = params["w_ih"]                # (4H, H), torch gate order i,f,g,o
    w_hh = params["w_hh"]                # (4H, H)
    b_ih = params["b_ih"]                # (4H,)
    b_hh = params["b_hh"]                # (4H,)
    H = emb.shape[1]
    B, S = tokens.shape

    # --- glue: pad batch to 8 sublanes, gather directly in time-major order ---
    B_pad = max(8, ((B + 7) // 8) * 8)
    tokens_p = jnp.zeros((B_pad, S), tokens.dtype).at[:B].set(tokens)  # pad rows = token 0 (zero emb)
    x_tm = jnp.take(emb, tokens_p.T, axis=0).astype(jnp.float32)       # (S, B_pad, H), no transpose pass

    # Concatenated gate weights, pre-transposed for x @ W: (H, 4H) with 4H lane-dense (=128 at H=32).
    wih_cat = jnp.transpose(w_ih, (1, 0)).astype(jnp.float32)          # (H, 4H)
    whh_cat = jnp.transpose(w_hh, (1, 0)).astype(jnp.float32)          # (H, 4H)
    bias = (b_ih + b_hh).reshape(1, 4 * H).astype(jnp.float32)         # (1, 4H)

    out = pl.pallas_call(
        lstm_maxpool_kernel,
        out_shape=jax.ShapeDtypeStruct((B_pad, H), jnp.float32),
        in_specs=[
            pl.BlockSpec(memory_space=pltpu.MemorySpace.VMEM),  # x (S, B_pad, H)
            pl.BlockSpec(memory_space=pltpu.MemorySpace.VMEM),  # w_ih_cat
            pl.BlockSpec(memory_space=pltpu.MemorySpace.VMEM),  # w_hh_cat
            pl.BlockSpec(memory_space=pltpu.MemorySpace.VMEM),  # bias
        ],
        out_specs=pl.BlockSpec(memory_space=pltpu.MemorySpace.VMEM),
    )(x_tm, wih_cat, whh_cat, bias)

    # drop batch padding, then torch-style .squeeze()
    return jnp.squeeze(out[:B])


def _reference_forward(tokens, params):
    """Pure-JAX reference mirroring the PyTorch forward (for correctness check)."""
    emb = params["embedding"]
    w_ih, w_hh = params["w_ih"], params["w_hh"]
    b_ih, b_hh = params["b_ih"], params["b_hh"]
    H = emb.shape[1]
    x = jnp.take(emb, tokens, axis=0).astype(jnp.float32)  # (B,S,H)
    B, S, _ = x.shape
    h = jnp.zeros((B, H), jnp.float32)
    c = jnp.zeros((B, H), jnp.float32)
    outs = []
    for t in range(S):
        gates = x[:, t, :] @ w_ih.T + h @ w_hh.T + b_ih + b_hh
        i_g = jax.nn.sigmoid(gates[:, 0 * H:1 * H])
        f_g = jax.nn.sigmoid(gates[:, 1 * H:2 * H])
        g_g = jnp.tanh(gates[:, 2 * H:3 * H])
        o_g = jax.nn.sigmoid(gates[:, 3 * H:4 * H])
        c = f_g * c + i_g * g_g
        h = o_g * jnp.tanh(c)
        outs.append(h)
    seq = jnp.stack(outs, axis=1)          # (B,S,H)
    return jnp.squeeze(jnp.max(seq, axis=1))


if __name__ == "__main__":
    # config (small, consistent with the module's forward)
    hidden_size = 32
    vocab_size = 15            # module uses vocab_size + 1 embeddings
    max_length = 8
    batch = 2

    key = jax.random.PRNGKey(0)
    k_emb, k_wih, k_whh, k_bih, k_bhh, k_tok = jax.random.split(key, 6)

    H = hidden_size
    V = vocab_size + 1

    embedding = 0.1 * jax.random.normal(k_emb, (V, H), jnp.float32)
    embedding = embedding.at[0].set(0.0)   # padding_idx=0 -> zero row

    params = {
        "embedding": embedding,
        "w_ih": 0.1 * jax.random.normal(k_wih, (4 * H, H), jnp.float32),
        "w_hh": 0.1 * jax.random.normal(k_whh, (4 * H, H), jnp.float32),
        "b_ih": 0.1 * jax.random.normal(k_bih, (4 * H,), jnp.float32),
        "b_hh": 0.1 * jax.random.normal(k_bhh, (4 * H,), jnp.float32),
        # NOTE: the module also defines self.layer = nn.Linear(H, H) but never uses it
        # in forward(), so it is intentionally omitted here.
    }

    tokens = jax.random.randint(k_tok, (batch, max_length), 0, V, dtype=jnp.int32)

    out = sentence_encoder_forward(tokens, params)
    out = jax.block_until_ready(out)

    ref = _reference_forward(tokens, params)
    np.testing.assert_allclose(np.asarray(out), np.asarray(ref), rtol=1e-5, atol=1e-5)

    print("KERNEL_OK")
</pallas_src>

<mosaic_0001>
module attributes {stable_mosaic.version = 11 : i64} {
  func.func @lstm_maxpool_kernel(%arg0: memref<8x8x32xf32, #tpu.memory_space<vmem>>, %arg1: memref<32x128xf32, #tpu.memory_space<vmem>>, %arg2: memref<32x128xf32, #tpu.memory_space<vmem>>, %arg3: memref<1x128xf32, #tpu.memory_space<vmem>>, %arg4: memref<8x32xf32, #tpu.memory_space<vmem>>) attributes {dimension_semantics = [], scalar_prefetch = 0 : i64, scratch_operands = 0 : i64, tpu.core_type = #tpu.core_type<tc>} {
    %c0 = arith.constant 0 : index
    %c0_0 = arith.constant 0 : index
    %c0_1 = arith.constant 0 : index
    %0 = vector.load %arg0[%c0, %c0_0, %c0_1] : memref<8x8x32xf32, #tpu.memory_space<vmem>>, vector<8x8x32xf32>
    %1 = vector.shape_cast %0 : vector<8x8x32xf32> to vector<64x32xf32>
    %c0_2 = arith.constant 0 : index
    %c0_3 = arith.constant 0 : index
    %2 = vector.load %arg1[%c0_2, %c0_3] : memref<32x128xf32, #tpu.memory_space<vmem>>, vector<32x128xf32>
    %cst = arith.constant dense<0.000000e+00> : vector<64x128xf32>
    %3 = tpu.matmul %1, %2, %cst {dimension_numbers = #tpu.dot_dimension_numbers<[1], [0], [0], [1], [0, 0, 1, 1], [], []>} : vector<64x32xf32>, vector<32x128xf32>, vector<64x128xf32> -> vector<64x128xf32>
    %c0_4 = arith.constant 0 : index
    %c0_5 = arith.constant 0 : index
    %4 = vector.load %arg3[%c0_4, %c0_5] : memref<1x128xf32, #tpu.memory_space<vmem>>, vector<1x128xf32>
    %5 = vector.broadcast %4 : vector<1x128xf32> to vector<64x128xf32>
    %6 = arith.addf %3, %5 : vector<64x128xf32>
    %7 = vector.shape_cast %6 : vector<64x128xf32> to vector<8x8x128xf32>
    %c0_6 = arith.constant 0 : index
    %c0_7 = arith.constant 0 : index
    %8 = vector.load %arg2[%c0_6, %c0_7] : memref<32x128xf32, #tpu.memory_space<vmem>>, vector<32x128xf32>
    %cst_8 = arith.constant 0.000000e+00 : f32
    %9 = vector.broadcast %cst_8 : f32 to vector<8x32xf32>
    %cst_9 = arith.constant 0.000000e+00 : f32
    %10 = vector.broadcast %cst_9 : f32 to vector<8x32xf32>
    %cst_10 = arith.constant 0xFF800000 : f32
    %11 = vector.broadcast %cst_10 : f32 to vector<8x32xf32>
    %12 = vector.extract_strided_slice %7 {offsets = [0, 0, 0], sizes = [1, 8, 128], strides = [1, 1, 1]} : vector<8x8x128xf32> to vector<1x8x128xf32>
    %13 = vector.shape_cast %12 : vector<1x8x128xf32> to vector<8x128xf32>
    %cst_11 = arith.constant dense<0.000000e+00> : vector<8x128xf32>
    %14 = tpu.matmul %9, %8, %cst_11 {dimension_numbers = #tpu.dot_dimension_numbers<[1], [0], [0], [1], [0, 0, 1, 1], [], []>} : vector<8x32xf32>, vector<32x128xf32>, vector<8x128xf32> -> vector<8x128xf32>
    %15 = arith.addf %13, %14 : vector<8x128xf32>
    %16 = vector.extract_strided_slice %15 {offsets = [0, 0], sizes = [8, 32], strides = [1, 1]} : vector<8x128xf32> to vector<8x32xf32>
    %17 = arith.negf %16 : vector<8x32xf32>
    %18 = math.exp %17 : vector<8x32xf32>
    %cst_12 = arith.constant 1.000000e+00 : f32
    %19 = vector.broadcast %cst_12 : f32 to vector<8x32xf32>
    %20 = arith.addf %19, %18 : vector<8x32xf32>
    %21 = arith.divf %19, %20 : vector<8x32xf32>
    %22 = vector.extract_strided_slice %15 {offsets = [0, 32], sizes = [8, 32], strides = [1, 1]} : vector<8x128xf32> to vector<8x32xf32>
    %23 = arith.negf %22 : vector<8x32xf32>
    %24 = math.exp %23 : vector<8x32xf32>
    %cst_13 = arith.constant 1.000000e+00 : f32
    %25 = vector.broadcast %cst_13 : f32 to vector<8x32xf32>
    %26 = arith.addf %25, %24 : vector<8x32xf32>
    %27 = arith.divf %25, %26 : vector<8x32xf32>
    %28 = vector.extract_strided_slice %15 {offsets = [0, 64], sizes = [8, 32], strides = [1, 1]} : vector<8x128xf32> to vector<8x32xf32>
    %29 = math.tanh %28 : vector<8x32xf32>
    %30 = vector.extract_strided_slice %15 {offsets = [0, 96], sizes = [8, 32], strides = [1, 1]} : vector<8x128xf32> to vector<8x32xf32>
    %31 = arith.negf %30 : vector<8x32xf32>
    %32 = math.exp %31 : vector<8x32xf32>
    %cst_14 = arith.constant 1.000000e+00 : f32
    %33 = vector.broadcast %cst_14 : f32 to vector<8x32xf32>
    %34 = arith.addf %33, %32 : vector<8x32xf32>
    %35 = arith.divf %33, %34 : vector<8x32xf32>
    %36 = arith.mulf %27, %10 : vector<8x32xf32>
    %37 = arith.mulf %21, %29 : vector<8x32xf32>
    %38 = arith.addf %36, %37 : vector<8x32xf32>
    %39 = math.tanh %38 : vector<8x32xf32>
    %40 = arith.mulf %35, %39 : vector<8x32xf32>
    %41 = arith.maximumf %11, %40 : vector<8x32xf32>
    %42 = vector.extract_strided_slice %7 {offsets = [1, 0, 0], sizes = [1, 8, 128], strides = [1, 1, 1]} : vector<8x8x128xf32> to vector<1x8x128xf32>
    %43 = vector.shape_cast %42 : vector<1x8x128xf32> to vector<8x128xf32>
    %cst_15 = arith.constant dense<0.000000e+00> : vector<8x128xf32>
    %44 = tpu.matmul %40, %8, %cst_15 {dimension_numbers = #tpu.dot_dimension_numbers<[1], [0], [0], [1], [0, 0, 1, 1], [], []>} : vector<8x32xf32>, vector<32x128xf32>, vector<8x128xf32> -> vector<8x128xf32>
    %45 = arith.addf %43, %44 : vector<8x128xf32>
    %46 = vector.extract_strided_slice %45 {offsets = [0, 0], sizes = [8, 32], strides = [1, 1]} : vector<8x128xf32> to vector<8x32xf32>
    %47 = arith.negf %46 : vector<8x32xf32>
    %48 = math.exp %47 : vector<8x32xf32>
    %cst_16 = arith.constant 1.000000e+00 : f32
    %49 = vector.broadcast %cst_16 : f32 to vector<8x32xf32>
    %50 = arith.addf %49, %48 : vector<8x32xf32>
    %51 = arith.divf %49, %50 : vector<8x32xf32>
    %52 = vector.extract_strided_slice %45 {offsets = [0, 32], sizes = [8, 32], strides = [1, 1]} : vector<8x128xf32> to vector<8x32xf32>
    %53 = arith.negf %52 : vector<8x32xf32>
    %54 = math.exp %53 : vector<8x32xf32>
    %cst_17 = arith.constant 1.000000e+00 : f32
    %55 = vector.broadcast %cst_17 : f32 to vector<8x32xf32>
    %56 = arith.addf %55, %54 : vector<8x32xf32>
    %57 = arith.divf %55, %56 : vector<8x32xf32>
    %58 = vector.extract_strided_slice %45 {offsets = [0, 64], sizes = [8, 32], strides = [1, 1]} : vector<8x128xf32> to vector<8x32xf32>
    %59 = math.tanh %58 : vector<8x32xf32>
    %60 = vector.extract_strided_slice %45 {offsets = [0, 96], sizes = [8, 32], strides = [1, 1]} : vector<8x128xf32> to vector<8x32xf32>
    %61 = arith.negf %60 : vector<8x32xf32>
    %62 = math.exp %61 : vector<8x32xf32>
    %cst_18 = arith.constant 1.000000e+00 : f32
    %63 = vector.broadcast %cst_18 : f32 to vector<8x32xf32>
    %64 = arith.addf %63, %62 : vector<8x32xf32>
    %65 = arith.divf %63, %64 : vector<8x32xf32>
    %66 = arith.mulf %57, %38 : vector<8x32xf32>
    %67 = arith.mulf %51, %59 : vector<8x32xf32>
    %68 = arith.addf %66, %67 : vector<8x32xf32>
    %69 = math.tanh %68 : vector<8x32xf32>
    %70 = arith.mulf %65, %69 : vector<8x32xf32>
    %71 = arith.maximumf %41, %70 : vector<8x32xf32>
    %72 = vector.extract_strided_slice %7 {offsets = [2, 0, 0], sizes = [1, 8, 128], strides = [1, 1, 1]} : vector<8x8x128xf32> to vector<1x8x128xf32>
    %73 = vector.shape_cast %72 : vector<1x8x128xf32> to vector<8x128xf32>
    %cst_19 = arith.constant dense<0.000000e+00> : vector<8x128xf32>
    %74 = tpu.matmul %70, %8, %cst_19 {dimension_numbers = #tpu.dot_dimension_numbers<[1], [0], [0], [1], [0, 0, 1, 1], [], []>} : vector<8x32xf32>, vector<32x128xf32>, vector<8x128xf32> -> vector<8x128xf32>
    %75 = arith.addf %73, %74 : vector<8x128xf32>
    %76 = vector.extract_strided_slice %75 {offsets = [0, 0], sizes = [8, 32], strides = [1, 1]} : vector<8x128xf32> to vector<8x32xf32>
    %77 = arith.negf %76 : vector<8x32xf32>
    %78 = math.exp %77 : vector<8x32xf32>
    %cst_20 = arith.constant 1.000000e+00 : f32
    %79 = vector.broadcast %cst_20 : f32 to vector<8x32xf32>
    %80 = arith.addf %79, %78 : vector<8x32xf32>
    %81 = arith.divf %79, %80 : vector<8x32xf32>
    %82 = vector.extract_strided_slice %75 {offsets = [0, 32], sizes = [8, 32], strides = [1, 1]} : vector<8x128xf32> to vector<8x32xf32>
    %83 = arith.negf %82 : vector<8x32xf32>
    %84 = math.exp %83 : vector<8x32xf32>
    %cst_21 = arith.constant 1.000000e+00 : f32
    %85 = vector.broadcast %cst_21 : f32 to vector<8x32xf32>
    %86 = arith.addf %85, %84 : vector<8x32xf32>
    %87 = arith.divf %85, %86 : vector<8x32xf32>
    %88 = vector.extract_strided_slice %75 {offsets = [0, 64], sizes = [8, 32], strides = [1, 1]} : vector<8x128xf32> to vector<8x32xf32>
    %89 = math.tanh %88 : vector<8x32xf32>
    %90 = vector.extract_strided_slice %75 {offsets = [0, 96], sizes = [8, 32], strides = [1, 1]} : vector<8x128xf32> to vector<8x32xf32>
    %91 = arith.negf %90 : vector<8x32xf32>
    %92 = math.exp %91 : vector<8x32xf32>
    %cst_22 = arith.constant 1.000000e+00 : f32
    %93 = vector.broadcast %cst_22 : f32 to vector<8x32xf32>
    %94 = arith.addf %93, %92 : vector<8x32xf32>
    %95 = arith.divf %93, %94 : vector<8x32xf32>
    %96 = arith.mulf %87, %68 : vector<8x32xf32>
    %97 = arith.mulf %81, %89 : vector<8x32xf32>
    %98 = arith.addf %96, %97 : vector<8x32xf32>
    %99 = math.tanh %98 : vector<8x32xf32>
    %100 = arith.mulf %95, %99 : vector<8x32xf32>
    %101 = arith.maximumf %71, %100 : vector<8x32xf32>
    %102 = vector.extract_strided_slice %7 {offsets = [3, 0, 0], sizes = [1, 8, 128], strides = [1, 1, 1]} : vector<8x8x128xf32> to vector<1x8x128xf32>
    %103 = vector.shape_cast %102 : vector<1x8x128xf32> to vector<8x128xf32>
    %cst_23 = arith.constant dense<0.000000e+00> : vector<8x128xf32>
    %104 = tpu.matmul %100, %8, %cst_23 {dimension_numbers = #tpu.dot_dimension_numbers<[1], [0], [0], [1], [0, 0, 1, 1], [], []>} : vector<8x32xf32>, vector<32x128xf32>, vector<8x128xf32> -> vector<8x128xf32>
    %105 = arith.addf %103, %104 : vector<8x128xf32>
    %106 = vector.extract_strided_slice %105 {offsets = [0, 0], sizes = [8, 32], strides = [1, 1]} : vector<8x128xf32> to vector<8x32xf32>
    %107 = arith.negf %106 : vector<8x32xf32>
    %108 = math.exp %107 : vector<8x32xf32>
    %cst_24 = arith.constant 1.000000e+00 : f32
    %109 = vector.broadcast %cst_24 : f32 to vector<8x32xf32>
    %110 = arith.addf %109, %108 : vector<8x32xf32>
    %111 = arith.divf %109, %110 : vector<8x32xf32>
    %112 = vector.extract_strided_slice %105 {offsets = [0, 32], sizes = [8, 32], strides = [1, 1]} : vector<8x128xf32> to vector<8x32xf32>
    %113 = arith.negf %112 : vector<8x32xf32>
    %114 = math.exp %113 : vector<8x32xf32>
    %cst_25 = arith.constant 1.000000e+00 : f32
    %115 = vector.broadcast %cst_25 : f32 to vector<8x32xf32>
    %116 = arith.addf %115, %114 : vector<8x32xf32>
    %117 = arith.divf %115, %116 : vector<8x32xf32>
    %118 = vector.extract_strided_slice %105 {offsets = [0, 64], sizes = [8, 32], strides = [1, 1]} : vector<8x128xf32> to vector<8x32xf32>
    %119 = math.tanh %118 : vector<8x32xf32>
    %120 = vector.extract_strided_slice %105 {offsets = [0, 96], sizes = [8, 32], strides = [1, 1]} : vector<8x128xf32> to vector<8x32xf32>
    %121 = arith.negf %120 : vector<8x32xf32>
    %122 = math.exp %121 : vector<8x32xf32>
    %cst_26 = arith.constant 1.000000e+00 : f32
    %123 = vector.broadcast %cst_26 : f32 to vector<8x32xf32>
    %124 = arith.addf %123, %122 : vector<8x32xf32>
    %125 = arith.divf %123, %124 : vector<8x32xf32>
    %126 = arith.mulf %117, %98 : vector<8x32xf32>
    %127 = arith.mulf %111, %119 : vector<8x32xf32>
    %128 = arith.addf %126, %127 : vector<8x32xf32>
    %129 = math.tanh %128 : vector<8x32xf32>
    %130 = arith.mulf %125, %129 : vector<8x32xf32>
    %131 = arith.maximumf %101, %130 : vector<8x32xf32>
    %132 = vector.extract_strided_slice %7 {offsets = [4, 0, 0], sizes = [1, 8, 128], strides = [1, 1, 1]} : vector<8x8x128xf32> to vector<1x8x128xf32>
    %133 = vector.shape_cast %132 : vector<1x8x128xf32> to vector<8x128xf32>
    %cst_27 = arith.constant dense<0.000000e+00> : vector<8x128xf32>
    %134 = tpu.matmul %130, %8, %cst_27 {dimension_numbers = #tpu.dot_dimension_numbers<[1], [0], [0], [1], [0, 0, 1, 1], [], []>} : vector<8x32xf32>, vector<32x128xf32>, vector<8x128xf32> -> vector<8x128xf32>
    %135 = arith.addf %133, %134 : vector<8x128xf32>
    %136 = vector.extract_strided_slice %135 {offsets = [0, 0], sizes = [8, 32], strides = [1, 1]} : vector<8x128xf32> to vector<8x32xf32>
    %137 = arith.negf %136 : vector<8x32xf32>
    %138 = math.exp %137 : vector<8x32xf32>
    %cst_28 = arith.constant 1.000000e+00 : f32
    %139 = vector.broadcast %cst_28 : f32 to vector<8x32xf32>
    %140 = arith.addf %139, %138 : vector<8x32xf32>
    %141 = arith.divf %139, %140 : vector<8x32xf32>
    %142 = vector.extract_strided_slice %135 {offsets = [0, 32], sizes = [8, 32], strides = [1, 1]} : vector<8x128xf32> to vector<8x32xf32>
    %143 = arith.negf %142 : vector<8x32xf32>
    %144 = math.exp %143 : vector<8x32xf32>
    %cst_29 = arith.constant 1.000000e+00 : f32
    %145 = vector.broadcast %cst_29 : f32 to vector<8x32xf32>
    %146 = arith.addf %145, %144 : vector<8x32xf32>
    %147 = arith.divf %145, %146 : vector<8x32xf32>
    %148 = vector.extract_strided_slice %135 {offsets = [0, 64], sizes = [8, 32], strides = [1, 1]} : vector<8x128xf32> to vector<8x32xf32>
    %149 = math.tanh %148 : vector<8x32xf32>
    %150 = vector.extract_strided_slice %135 {offsets = [0, 96], sizes = [8, 32], strides = [1, 1]} : vector<8x128xf32> to vector<8x32xf32>
    %151 = arith.negf %150 : vector<8x32xf32>
    %152 = math.exp %151 : vector<8x32xf32>
    %cst_30 = arith.constant 1.000000e+00 : f32
    %153 = vector.broadcast %cst_30 : f32 to vector<8x32xf32>
    %154 = arith.addf %153, %152 : vector<8x32xf32>
    %155 = arith.divf %153, %154 : vector<8x32xf32>
    %156 = arith.mulf %147, %128 : vector<8x32xf32>
    %157 = arith.mulf %141, %149 : vector<8x32xf32>
    %158 = arith.addf %156, %157 : vector<8x32xf32>
    %159 = math.tanh %158 : vector<8x32xf32>
    %160 = arith.mulf %155, %159 : vector<8x32xf32>
    %161 = arith.maximumf %131, %160 : vector<8x32xf32>
    %162 = vector.extract_strided_slice %7 {offsets = [5, 0, 0], sizes = [1, 8, 128], strides = [1, 1, 1]} : vector<8x8x128xf32> to vector<1x8x128xf32>
    %163 = vector.shape_cast %162 : vector<1x8x128xf32> to vector<8x128xf32>
    %cst_31 = arith.constant dense<0.000000e+00> : vector<8x128xf32>
    %164 = tpu.matmul %160, %8, %cst_31 {dimension_numbers = #tpu.dot_dimension_numbers<[1], [0], [0], [1], [0, 0, 1, 1], [], []>} : vector<8x32xf32>, vector<32x128xf32>, vector<8x128xf32> -> vector<8x128xf32>
    %165 = arith.addf %163, %164 : vector<8x128xf32>
    %166 = vector.extract_strided_slice %165 {offsets = [0, 0], sizes = [8, 32], strides = [1, 1]} : vector<8x128xf32> to vector<8x32xf32>
    %167 = arith.negf %166 : vector<8x32xf32>
    %168 = math.exp %167 : vector<8x32xf32>
    %cst_32 = arith.constant 1.000000e+00 : f32
    %169 = vector.broadcast %cst_32 : f32 to vector<8x32xf32>
    %170 = arith.addf %169, %168 : vector<8x32xf32>
    %171 = arith.divf %169, %170 : vector<8x32xf32>
    %172 = vector.extract_strided_slice %165 {offsets = [0, 32], sizes = [8, 32], strides = [1, 1]} : vector<8x128xf32> to vector<8x32xf32>
    %173 = arith.negf %172 : vector<8x32xf32>
    %174 = math.exp %173 : vector<8x32xf32>
    %cst_33 = arith.constant 1.000000e+00 : f32
    %175 = vector.broadcast %cst_33 : f32 to vector<8x32xf32>
    %176 = arith.addf %175, %174 : vector<8x32xf32>
    %177 = arith.divf %175, %176 : vector<8x32xf32>
    %178 = vector.extract_strided_slice %165 {offsets = [0, 64], sizes = [8, 32], strides = [1, 1]} : vector<8x128xf32> to vector<8x32xf32>
    %179 = math.tanh %178 : vector<8x32xf32>
    %180 = vector.extract_strided_slice %165 {offsets = [0, 96], sizes = [8, 32], strides = [1, 1]} : vector<8x128xf32> to vector<8x32xf32>
    %181 = arith.negf %180 : vector<8x32xf32>
    %182 = math.exp %181 : vector<8x32xf32>
    %cst_34 = arith.constant 1.000000e+00 : f32
    %183 = vector.broadcast %cst_34 : f32 to vector<8x32xf32>
    %184 = arith.addf %183, %182 : vector<8x32xf32>
    %185 = arith.divf %183, %184 : vector<8x32xf32>
    %186 = arith.mulf %177, %158 : vector<8x32xf32>
    %187 = arith.mulf %171, %179 : vector<8x32xf32>
    %188 = arith.addf %186, %187 : vector<8x32xf32>
    %189 = math.tanh %188 : vector<8x32xf32>
    %190 = arith.mulf %185, %189 : vector<8x32xf32>
    %191 = arith.maximumf %161, %190 : vector<8x32xf32>
    %192 = vector.extract_strided_slice %7 {offsets = [6, 0, 0], sizes = [1, 8, 128], strides = [1, 1, 1]} : vector<8x8x128xf32> to vector<1x8x128xf32>
    %193 = vector.shape_cast %192 : vector<1x8x128xf32> to vector<8x128xf32>
    %cst_35 = arith.constant dense<0.000000e+00> : vector<8x128xf32>
    %194 = tpu.matmul %190, %8, %cst_35 {dimension_numbers = #tpu.dot_dimension_numbers<[1], [0], [0], [1], [0, 0, 1, 1], [], []>} : vector<8x32xf32>, vector<32x128xf32>, vector<8x128xf32> -> vector<8x128xf32>
    %195 = arith.addf %193, %194 : vector<8x128xf32>
    %196 = vector.extract_strided_slice %195 {offsets = [0, 0], sizes = [8, 32], strides = [1, 1]} : vector<8x128xf32> to vector<8x32xf32>
    %197 = arith.negf %196 : vector<8x32xf32>
    %198 = math.exp %197 : vector<8x32xf32>
    %cst_36 = arith.constant 1.000000e+00 : f32
    %199 = vector.broadcast %cst_36 : f32 to vector<8x32xf32>
    %200 = arith.addf %199, %198 : vector<8x32xf32>
    %201 = arith.divf %199, %200 : vector<8x32xf32>
    %202 = vector.extract_strided_slice %195 {offsets = [0, 32], sizes = [8, 32], strides = [1, 1]} : vector<8x128xf32> to vector<8x32xf32>
    %203 = arith.negf %202 : vector<8x32xf32>
    %204 = math.exp %203 : vector<8x32xf32>
    %cst_37 = arith.constant 1.000000e+00 : f32
    %205 = vector.broadcast %cst_37 : f32 to vector<8x32xf32>
    %206 = arith.addf %205, %204 : vector<8x32xf32>
    %207 = arith.divf %205, %206 : vector<8x32xf32>
    %208 = vector.extract_strided_slice %195 {offsets = [0, 64], sizes = [8, 32], strides = [1, 1]} : vector<8x128xf32> to vector<8x32xf32>
    %209 = math.tanh %208 : vector<8x32xf32>
    %210 = vector.extract_strided_slice %195 {offsets = [0, 96], sizes = [8, 32], strides = [1, 1]} : vector<8x128xf32> to vector<8x32xf32>
    %211 = arith.negf %210 : vector<8x32xf32>
    %212 = math.exp %211 : vector<8x32xf32>
    %cst_38 = arith.constant 1.000000e+00 : f32
    %213 = vector.broadcast %cst_38 : f32 to vector<8x32xf32>
    %214 = arith.addf %213, %212 : vector<8x32xf32>
    %215 = arith.divf %213, %214 : vector<8x32xf32>
    %216 = arith.mulf %207, %188 : vector<8x32xf32>
    %217 = arith.mulf %201, %209 : vector<8x32xf32>
    %218 = arith.addf %216, %217 : vector<8x32xf32>
    %219 = math.tanh %218 : vector<8x32xf32>
    %220 = arith.mulf %215, %219 : vector<8x32xf32>
    %221 = arith.maximumf %191, %220 : vector<8x32xf32>
    %222 = vector.extract_strided_slice %7 {offsets = [7, 0, 0], sizes = [1, 8, 128], strides = [1, 1, 1]} : vector<8x8x128xf32> to vector<1x8x128xf32>
    %223 = vector.shape_cast %222 : vector<1x8x128xf32> to vector<8x128xf32>
    %cst_39 = arith.constant dense<0.000000e+00> : vector<8x128xf32>
    %224 = tpu.matmul %220, %8, %cst_39 {dimension_numbers = #tpu.dot_dimension_numbers<[1], [0], [0], [1], [0, 0, 1, 1], [], []>} : vector<8x32xf32>, vector<32x128xf32>, vector<8x128xf32> -> vector<8x128xf32>
    %225 = arith.addf %223, %224 : vector<8x128xf32>
    %226 = vector.extract_strided_slice %225 {offsets = [0, 0], sizes = [8, 32], strides = [1, 1]} : vector<8x128xf32> to vector<8x32xf32>
    %227 = arith.negf %226 : vector<8x32xf32>
    %228 = math.exp %227 : vector<8x32xf32>
    %cst_40 = arith.constant 1.000000e+00 : f32
    %229 = vector.broadcast %cst_40 : f32 to vector<8x32xf32>
    %230 = arith.addf %229, %228 : vector<8x32xf32>
    %231 = arith.divf %229, %230 : vector<8x32xf32>
    %232 = vector.extract_strided_slice %225 {offsets = [0, 32], sizes = [8, 32], strides = [1, 1]} : vector<8x128xf32> to vector<8x32xf32>
    %233 = arith.negf %232 : vector<8x32xf32>
    %234 = math.exp %233 : vector<8x32xf32>
    %cst_41 = arith.constant 1.000000e+00 : f32
    %235 = vector.broadcast %cst_41 : f32 to vector<8x32xf32>
    %236 = arith.addf %235, %234 : vector<8x32xf32>
    %237 = arith.divf %235, %236 : vector<8x32xf32>
    %238 = vector.extract_strided_slice %225 {offsets = [0, 64], sizes = [8, 32], strides = [1, 1]} : vector<8x128xf32> to vector<8x32xf32>
    %239 = math.tanh %238 : vector<8x32xf32>
    %240 = vector.extract_strided_slice %225 {offsets = [0, 96], sizes = [8, 32], strides = [1, 1]} : vector<8x128xf32> to vector<8x32xf32>
    %241 = arith.negf %240 : vector<8x32xf32>
    %242 = math.exp %241 : vector<8x32xf32>
    %cst_42 = arith.constant 1.000000e+00 : f32
    %243 = vector.broadcast %cst_42 : f32 to vector<8x32xf32>
    %244 = arith.addf %243, %242 : vector<8x32xf32>
    %245 = arith.divf %243, %244 : vector<8x32xf32>
    %246 = arith.mulf %237, %218 : vector<8x32xf32>
    %247 = arith.mulf %231, %239 : vector<8x32xf32>
    %248 = arith.addf %246, %247 : vector<8x32xf32>
    %249 = math.tanh %248 : vector<8x32xf32>
    %250 = arith.mulf %245, %249 : vector<8x32xf32>
    %251 = arith.maximumf %221, %250 : vector<8x32xf32>
    %c0_43 = arith.constant 0 : index
    %c0_44 = arith.constant 0 : index
    %252 = vector.load %arg4[%c0_43, %c0_44] : memref<8x32xf32, #tpu.memory_space<vmem>>, vector<8x32xf32>
    tpu.vector_store %arg4[%c0_43, %c0_44], %251 {strides = array<i32>} : memref<8x32xf32, #tpu.memory_space<vmem>>, vector<8x32xf32>,
    return
  }
}

</mosaic_0001>

<llo_original>
// kernel: tpu_custom_call.1
$region0: #{tpu_custom_call.1}
  #allocation0 [shape = 'u32[]', space=smem, size = 0x4, offset = 0x4, fixed_abs, tag = 'smem constant byte address 0x4 - core index']
  #allocation1 [shape = 'u32[144,128]{1,0:T(1,128)}', space=vmem, size = 0x12000, scoped, tag = 'internal scratch']
  %s0 = inlined_call_operand.hbm [shape: f32[8,8,32], index: 0, kind: input, shape index: {}]
  %s1 = inlined_call_operand.hbm [shape: f32[32,128], index: 1, kind: input, shape index: {}]
  %s2 = inlined_call_operand.hbm [shape: f32[32,128], index: 2, kind: input, shape index: {}]
  %s3 = inlined_call_operand.vmem [shape: f32[1,128], index: 3, kind: input, shape index: {}]
  %s4 = inlined_call_operand.hbm [shape: f32[8,32], index: 4, kind: output, shape index: {}]
  %s5 = sld [smem:[#allocation0]]
  $region38: #{tpu_custom_call.1} parent=0
    _
  %s7 = ssub.s32 1, %s5
  %s8 = scalar_select 0, %s7, %s5
  $region1: #{tpu_custom_call.1} parent=0
    #allocation2 [shape = 'u8[32768]{0}', space=vmem, size = 0x8000, scoped, tag = 'input window, operand 0, single buffered']
    #allocation3 [shape = 's32[1]{0}', space=sflag, size = 0x4, scoped, tag = 'scoped memory for tpu_custom_call.1']
    #allocation4 [shape = 's32[1]{0}', space=sflag, size = 0x4, scoped, tag = 'scoped memory for tpu_custom_call.1']
    #allocation5 [shape = 'u8[16384]{0}', space=vmem, size = 0x4000, scoped, tag = 'input window, operand 1, single buffered']
    #allocation6 [shape = 's32[1]{0}', space=sflag, size = 0x4, scoped, tag = 'scoped memory for tpu_custom_call.1']
    #allocation7 [shape = 'u8[16384]{0}', space=vmem, size = 0x4000, scoped, tag = 'input window, operand 2, single buffered']
    #allocation8 [shape = 'u8[4096]{0}', space=vmem, size = 0x1000, scoped, tag = 'output window, operand 0, single buffered']
    %9 = vsyncpa [#allocation3], 0
    %10 = vsyncpa [#allocation6], 0
    %11 = vsyncpa [#allocation4], 0
    // Predicated region
    $region2: #{tpu_custom_call.1} parent=1 // pred_check
      _
    $region3: #{tpu_custom_call.1} parent=1 // pred_check_branch
      %13 = sbr.rel (0) target = $region5
    $region4: #{tpu_custom_call.1} parent=1 // pred_region
      %s15 = ssub.s32 1024, 1024
      %16 = vsyncadd [#allocation3], %s15
      %s17 = sshll.u32 [#allocation2], 4
      %s18 = int_to_ptr.vmem [resolvable:$true] %s17
      %23 = dma.hbm_to_vmem [thread:$0]  %s0, 1024, %s18, [#allocation3], 128, 128, 8
    $region5: #{tpu_custom_call.1} parent=1 // pred_fallthru
      _
    // Predicated region
    $region6: #{tpu_custom_call.1} parent=1 // pred_check
      _
    $region7: #{tpu_custom_call.1} parent=1 // pred_check_branch
      %25 = sbr.rel (0) target = $region9
    $region8: #{tpu_custom_call.1} parent=1 // pred_region
      %s27 = ssub.s32 512, 512
      %28 = vsyncadd [#allocation6], %s27
      %s29 = sshll.u32 [#allocation5], 4
      %s30 = int_to_ptr.vmem [resolvable:$true] %s29
      %35 = dma.hbm_to_vmem [thread:$0]  %s1, 512, %s30, [#allocation6], 128, 128, 8
    $region9: #{tpu_custom_call.1} parent=1 // pred_fallthru
      _
    // Predicated region
    $region10: #{tpu_custom_call.1} parent=1 // pred_check
      _
    $region11: #{tpu_custom_call.1} parent=1 // pred_check_branch
      %37 = sbr.rel (0) target = $region13
    $region12: #{tpu_custom_call.1} parent=1 // pred_region
      %s39 = ssub.s32 512, 512
      %40 = vsyncadd [#allocation6], %s39
      %s41 = sshll.u32 [#allocation7], 4
      %s42 = int_to_ptr.vmem [resolvable:$true] %s41
      %47 = dma.hbm_to_vmem [thread:$0]  %s2, 512, %s42, [#allocation6], 128, 128, 8
    $region13: #{tpu_custom_call.1} parent=1 // pred_fallthru
      _
    // Predicated region
    $region14: #{tpu_custom_call.1} parent=1 // pred_check
      _
    $region15: #{tpu_custom_call.1} parent=1 // pred_check_branch
      %49 = sbr.rel (0) target = $region17
    $region16: #{tpu_custom_call.1} parent=1 // pred_region
      _
    $region17: #{tpu_custom_call.1} parent=1 // pred_fallthru
      _
    // Predicated region
    $region18: #{tpu_custom_call.1} parent=1 // pred_check
      _
    $region19: #{tpu_custom_call.1} parent=1 // pred_check_branch
      %51 = sbr.rel (0) target = $region21
    $region20: #{tpu_custom_call.1} parent=1 // pred_region
      %52 = dma.done [#allocation3], 1024
    $region21: #{tpu_custom_call.1} parent=1 // pred_fallthru
      _
    // Predicated region
    $region22: #{tpu_custom_call.1} parent=1 // pred_check
      _
    $region23: #{tpu_custom_call.1} parent=1 // pred_check_branch
      %54 = sbr.rel (0) target = $region25
    $region24: #{tpu_custom_call.1} parent=1 // pred_region
      %55 = dma.done [#allocation6], 512
    $region25: #{tpu_custom_call.1} parent=1 // pred_fallthru
      _
    // Predicated region
    $region26: #{tpu_custom_call.1} parent=1 // pred_check
      _
    $region27: #{tpu_custom_call.1} parent=1 // pred_check_branch
      %57 = sbr.rel (0) target = $region29
    $region28: #{tpu_custom_call.1} parent=1 // pred_region
      %58 = dma.done [#allocation6], 512
    $region29: #{tpu_custom_call.1} parent=1 // pred_fallthru
      _
    %v59 = vld [vmem:[#allocation2] sm:$0xff]
    %v60 = vld [vmem:[#allocation2 + $0x8] sm:$0xff]
    %v61 = vld [vmem:[#allocation2 + $0x10] sm:$0xff]
    %v62 = vld [vmem:[#allocation2 + $0x18] sm:$0xff]
    %v63 = vld [vmem:[#allocation2 + $0x20] sm:$0xff]
    %v64 = vld [vmem:[#allocation2 + $0x28] sm:$0xff]
    %v65 = vld [vmem:[#allocation2 + $0x30] sm:$0xff]
    %v66 = vld [vmem:[#allocation2 + $0x38] sm:$0xff]
    %v67 = vld [vmem:[#allocation5] sm:$0xff]
    %v68 = vld [vmem:[#allocation5 + $0x8] sm:$0xff]
    %v69 = vld [vmem:[#allocation5 + $0x10] sm:$0xff]
    %v70 = vld [vmem:[#allocation5 + $0x18] sm:$0xff]
    %v71 = vld [vmem:[%s3] sm:$0x1]
    %v73 = vlaneseq
    %v74 = vshrl.u32 %v73, 7
    %v75 = vsub.s32 0, %v74
    %v76 = vrot.slane %v71, %v75
    %vm78 = vcmask 261120
    %v80 = vsel %vm78, %v59, 0
    %v83 = vsel %vm78, %v60, 0
    %v86 = vsel %vm78, %v61, 0
    %v89 = vsel %vm78, %v62, 0
    %v92 = vsel %vm78, %v63, 0
    %v95 = vsel %vm78, %v64, 0
    %v98 = vsel %vm78, %v65, 0
    %v101 = vsel %vm78, %v66, 0
    %103 = vmatprep.subr.mxu0 0.0
    %104 = vmatpush1.msra.mxu0 %v67
    %105 = vmatprep.subr.mxu0 0.0
    %106 = vmatpush1.msra.mxu0 %v68
    %107 = vmatprep.subr.mxu0 0.0
    %108 = vmatpush1.msra.mxu0 %v69
    %109 = vmatprep.subr.mxu0 0.0
    %110 = vmatpush1.msra.mxu0 %v70
    %111 = vmatprep.subr.mxu0 0.0
    %112 = vmatpush1.msra.mxu0 0.0
    %113 = vmatprep.subr.mxu0 0.0
    %114 = vmatpush1.msra.mxu0 0.0
    %115 = vmatprep.subr.mxu0 0.0
    %116 = vmatpush1.msra.mxu0 0.0
    %117 = vmatprep.subr.mxu0 0.0
    %118 = vmatpush1.msra.mxu0 0.0
    %119 = vmatprep.subr.mxu0 0.0
    %120 = vmatpush1.msra.mxu0 0.0
    %121 = vmatprep.subr.mxu0 0.0
    %122 = vmatpush1.msra.mxu0 0.0
    %123 = vmatprep.subr.mxu0 0.0
    %124 = vmatpush1.msra.mxu0 0.0
    %125 = vmatprep.subr.mxu0 0.0
    %126 = vmatpush1.msra.mxu0 0.0
    %127 = vmatprep.subr.mxu0 0.0
    %128 = vmatpush1.msra.mxu0 0.0
    %129 = vmatprep.subr.mxu0 0.0
    %130 = vmatpush1.msra.mxu0 0.0
    %131 = vmatprep.subr.mxu0 0.0
    %132 = vmatpush1.msra.mxu0 0.0
    %133 = vmatprep.subr.mxu0 0.0
    %134 = vmatpush1.msra.mxu0 0.0
    %135 = vmatprep.subr.mxu0 0.0
    %136 = vmatpush1.msra.mxu0 0.0
    %137 = vmatprep.subr.mxu0 0.0
    %138 = vmatpush1.msra.mxu0 0.0
    %139 = vmatprep.subr.mxu0 0.0
    %140 = vmatpush1.msra.mxu0 0.0
    %141 = vmatprep.subr.mxu0 0.0
    %142 = vmatpush1.msra.mxu0 0.0
    %143 = vmatprep.subr.mxu0 0.0
    %144 = vmatpush1.msra.mxu0 0.0
    %145 = vmatprep.subr.mxu0 0.0
    %146 = vmatpush1.msra.mxu0 0.0
    %147 = vmatprep.subr.mxu0 0.0
    %148 = vmatpush1.msra.mxu0 0.0
    %149 = vmatprep.subr.mxu0 0.0
    %150 = vmatpush1.msra.mxu0 0.0
    %151 = vmatprep.subr.mxu0 0.0
    %152 = vmatpush1.msra.mxu0 0.0
    %153 = vmatprep.subr.mxu0 0.0
    %154 = vmatpush1.msra.mxu0 0.0
    %155 = vmatprep.subr.mxu0 0.0
    %156 = vmatpush1.msra.mxu0 0.0
    %157 = vmatprep.subr.mxu0 0.0
    %158 = vmatpush1.msra.mxu0 0.0
    %159 = vmatprep.subr.mxu0 0.0
    %160 = vmatpush1.msra.mxu0 0.0
    %161 = vmatprep.subr.mxu0 0.0
    %162 = vmatpush1.msra.mxu0 0.0
    %163 = vmatprep.subr.mxu0 0.0
    %164 = vmatpush1.msra.mxu0 0.0
    %165 = vmatprep.subr.mxu0 0.0
    %166 = vmatpush1.msra.mxu0 0.0
    %167 = vmatprep.mubr.f32.mxu0 0.0
    %168 = vmatmul.mubr.f32.gmra.mrb[0].mxu0 %v80
    %v169 = vpop.f32.mrb[0].mxu0
    %v170 = vadd.f32 %v76, %v169
    %v171 = vpop.f32.mrb[0].mxu0
    %172 = vmatprep.mubr.f32.mxu0 0.0
    %173 = vmatmul.mubr.f32.gmra.mrb[0].mxu0 %v83
    %v174 = vpop.f32.mrb[0].mxu0
    %v175 = vadd.f32 %v76, %v174
    %v176 = vpop.f32.mrb[0].mxu0
    %177 = vmatprep.mubr.f32.mxu0 0.0
    %178 = vmatmul.mubr.f32.gmra.mrb[0].mxu0 %v86
    %v179 = vpop.f32.mrb[0].mxu0
    %v180 = vadd.f32 %v76, %v179
    %v181 = vpop.f32.mrb[0].mxu0
    %182 = vmatprep.mubr.f32.mxu0 0.0
    %183 = vmatmul.mubr.f32.gmra.mrb[0].mxu0 %v89
    %v184 = vpop.f32.mrb[0].mxu0
    %v185 = vadd.f32 %v76, %v184
    %v186 = vpop.f32.mrb[0].mxu0
    %187 = vmatprep.mubr.f32.mxu0 0.0
    %188 = vmatmul.mubr.f32.gmra.mrb[0].mxu0 %v92
    %v189 = vpop.f32.mrb[0].mxu0
    %v190 = vadd.f32 %v76, %v189
    %v191 = vpop.f32.mrb[0].mxu0
    %192 = vmatprep.mubr.f32.mxu0 0.0
    %193 = vmatmul.mubr.f32.gmra.mrb[0].mxu0 %v95
    %v194 = vpop.f32.mrb[0].mxu0
    %v195 = vadd.f32 %v76, %v194
    %v196 = vpop.f32.mrb[0].mxu0
    %197 = vmatprep.mubr.f32.mxu0 0.0
    %198 = vmatmul.mubr.f32.gmra.mrb[0].mxu0 %v98
    %v199 = vpop.f32.mrb[0].mxu0
    %v200 = vadd.f32 %v76, %v199
    %v201 = vpop.f32.mrb[0].mxu0
    %202 = vmatprep.mubr.f32.mxu0 0.0
    %203 = vmatmul.mubr.f32.gmra.mrb[0].mxu0 %v101
    %v204 = vpop.f32.mrb[0].mxu0
    %v205 = vadd.f32 %v76, %v204
    %v206 = vpop.f32.mrb[0].mxu0
    %207 = vdwg.mxu0
    %v208 = vld [vmem:[#allocation7] sm:$0xff]
    %v209 = vld [vmem:[#allocation7 + $0x8] sm:$0xff]
    %v210 = vld [vmem:[#allocation7 + $0x10] sm:$0xff]
    %v211 = vld [vmem:[#allocation7 + $0x18] sm:$0xff]
    %v213 = vsel %vm78, 0.0, 0
    %215 = vmatprep.subr.mxu0 0.0
    %216 = vmatpush1.msra.mxu0 %v208
    %217 = vmatprep.subr.mxu0 0.0
    %218 = vmatpush1.msra.mxu0 %v209
    %219 = vmatprep.subr.mxu0 0.0
    %220 = vmatpush1.msra.mxu0 %v210
    %221 = vmatprep.subr.mxu0 0.0
    %222 = vmatpush1.msra.mxu0 %v211
    %223 = vmatprep.subr.mxu0 0.0
    %224 = vmatpush1.msra.mxu0 0.0
    %225 = vmatprep.subr.mxu0 0.0
    %226 = vmatpush1.msra.mxu0 0.0
    %227 = vmatprep.subr.mxu0 0.0
    %228 = vmatpush1.msra.mxu0 0.0
    %229 = vmatprep.subr.mxu0 0.0
    %230 = vmatpush1.msra.mxu0 0.0
    %231 = vmatprep.subr.mxu0 0.0
    %232 = vmatpush1.msra.mxu0 0.0
    %233 = vmatprep.subr.mxu0 0.0
    %234 = vmatpush1.msra.mxu0 0.0
    %235 = vmatprep.subr.mxu0 0.0
    %236 = vmatpush1.msra.mxu0 0.0
    %237 = vmatprep.subr.mxu0 0.0
    %238 = vmatpush1.msra.mxu0 0.0
    %239 = vmatprep.subr.mxu0 0.0
    %240 = vmatpush1.msra.mxu0 0.0
    %241 = vmatprep.subr.mxu0 0.0
    %242 = vmatpush1.msra.mxu0 0.0
    %243 = vmatprep.subr.mxu0 0.0
    %244 = vmatpush1.msra.mxu0 0.0
    %245 = vmatprep.subr.mxu0 0.0
    %246 = vmatpush1.msra.mxu0 0.0
    %247 = vmatprep.subr.mxu0 0.0
    %248 = vmatpush1.msra.mxu0 0.0
    %249 = vmatprep.subr.mxu0 0.0
    %250 = vmatpush1.msra.mxu0 0.0
    %251 = vmatprep.subr.mxu0 0.0
    %252 = vmatpush1.msra.mxu0 0.0
    %253 = vmatprep.subr.mxu0 0.0
    %254 = vmatpush1.msra.mxu0 0.0
    %255 = vmatprep.subr.mxu0 0.0
    %256 = vmatpush1.msra.mxu0 0.0
    %257 = vmatprep.subr.mxu0 0.0
    %258 = vmatpush1.msra.mxu0 0.0
    %259 = vmatprep.subr.mxu0 0.0
    %260 = vmatpush1.msra.mxu0 0.0
    %261 = vmatprep.subr.mxu0 0.0
    %262 = vmatpush1.msra.mxu0 0.0
    %263 = vmatprep.subr.mxu0 0.0
    %264 = vmatpush1.msra.mxu0 0.0
    %265 = vmatprep.subr.mxu0 0.0
    %266 = vmatpush1.msra.mxu0 0.0
    %267 = vmatprep.subr.mxu0 0.0
    %268 = vmatpush1.msra.mxu0 0.0
    %269 = vmatprep.subr.mxu0 0.0
    %270 = vmatpush1.msra.mxu0 0.0
    %271 = vmatprep.subr.mxu0 0.0
    %272 = vmatpush1.msra.mxu0 0.0
    %273 = vmatprep.subr.mxu0 0.0
    %274 = vmatpush1.msra.mxu0 0.0
    %275 = vmatprep.subr.mxu0 0.0
    %276 = vmatpush1.msra.mxu0 0.0
    %277 = vmatprep.subr.mxu0 0.0
    %278 = vmatpush1.msra.mxu0 0.0
    %279 = vmatprep.mubr.f32.mxu0 0.0
    %280 = vmatmul.mubr.f32.gmra.mrb[0].mxu0 %v213
    %v281 = vpop.f32.mrb[0].mxu0
    %v282 = vadd.f32 0.0, %v281
    %v283 = vpop.f32.mrb[0].mxu0
    %284 = vdwg.mxu0
    %v285 = vadd.f32 %v170, %v282
    %v286 = vxor.u32 %v285, 2147483648
    %v287 = vmul.f32 %v286, 1.442695
    %v288 = vpow.pop %v287
    %v289 = vadd.f32 %v288, 1.0
    %v290 = vrcp.pop %v289
    %v291 = vmul.f32 1.0, %v290
    %v292 = vtanh.pop %v285
    %v293 = vmul.f32 %v291, 0.0
    %295 = vrot.lane.b32.xlu0 %v292, 64
    %v296 = vpop.permute.xlu0 %295
    %v298 = vmul.f32 %v291, %v296
    %300 = vrot.lane.b32.xlu0 %v298, 32
    %v301 = vpop.permute.xlu0 %300
    %v303 = vadd.f32 %v293, %v301
    %v304 = vtanh.pop %v303
    %306 = vrot.lane.b32.xlu0 %v304, 64
    %v307 = vpop.permute.xlu0 %306
    %v309 = vmul.f32 %v291, %v307
    %311 = vrot.lane.b32.xlu0 %v309, 32
    %v312 = vpop.permute.xlu0 %311
    %v313 = vsel %vm78, %v312, 0
    %315 = vmatprep.subr.mxu0 0.0
    %316 = vmatpush1.msra.mxu0 %v208
    %317 = vmatprep.subr.mxu0 0.0
    %318 = vmatpush1.msra.mxu0 %v209
    %319 = vmatprep.subr.mxu0 0.0
    %320 = vmatpush1.msra.mxu0 %v210
    %321 = vmatprep.subr.mxu0 0.0
    %322 = vmatpush1.msra.mxu0 %v211
    %323 = vmatprep.subr.mxu0 0.0
    %324 = vmatpush1.msra.mxu0 0.0
    %325 = vmatprep.subr.mxu0 0.0
    %326 = vmatpush1.msra.mxu0 0.0
    %327 = vmatprep.subr.mxu0 0.0
    %328 = vmatpush1.msra.mxu0 0.0
    %329 = vmatprep.subr.mxu0 0.0
    %330 = vmatpush1.msra.mxu0 0.0
    %331 = vmatprep.subr.mxu0 0.0
    %332 = vmatpush1.msra.mxu0 0.0
    %333 = vmatprep.subr.mxu0 0.0
    %334 = vmatpush1.msra.mxu0 0.0
    %335 = vmatprep.subr.mxu0 0.0
    %336 = vmatpush1.msra.mxu0 0.0
    %337 = vmatprep.subr.mxu0 0.0
    %338 = vmatpush1.msra.mxu0 0.0
    %339 = vmatprep.subr.mxu0 0.0
    %340 = vmatpush1.msra.mxu0 0.0
    %341 = vmatprep.subr.mxu0 0.0
    %342 = vmatpush1.msra.mxu0 0.0
    %343 = vmatprep.subr.mxu0 0.0
    %344 = vmatpush1.msra.mxu0 0.0
    %345 = vmatprep.subr.mxu0 0.0
    %346 = vmatpush1.msra.mxu0 0.0
    %347 = vmatprep.subr.mxu0 0.0
    %348 = vmatpush1.msra.mxu0 0.0
    %349 = vmatprep.subr.mxu0 0.0
    %350 = vmatpush1.msra.mxu0 0.0
    %351 = vmatprep.subr.mxu0 0.0
    %352 = vmatpush1.msra.mxu0 0.0
    %353 = vmatprep.subr.mxu0 0.0
    %354 = vmatpush1.msra.mxu0 0.0
    %355 = vmatprep.subr.mxu0 0.0
    %356 = vmatpush1.msra.mxu0 0.0
    %357 = vmatprep.subr.mxu0 0.0
    %358 = vmatpush1.msra.mxu0 0.0
    %359 = vmatprep.subr.mxu0 0.0
    %360 = vmatpush1.msra.mxu0 0.0
    %361 = vmatprep.subr.mxu0 0.0
    %362 = vmatpush1.msra.mxu0 0.0
    %363 = vmatprep.subr.mxu0 0.0
    %364 = vmatpush1.msra.mxu0 0.0
    %365 = vmatprep.subr.mxu0 0.0
    %366 = vmatpush1.msra.mxu0 0.0
    %367 = vmatprep.subr.mxu0 0.0
    %368 = vmatpush1.msra.mxu0 0.0
    %369 = vmatprep.subr.mxu0 0.0
    %370 = vmatpush1.msra.mxu0 0.0
    %371 = vmatprep.subr.mxu0 0.0
    %372 = vmatpush1.msra.mxu0 0.0
    %373 = vmatprep.subr.mxu0 0.0
    %374 = vmatpush1.msra.mxu0 0.0
    %375 = vmatprep.subr.mxu0 0.0
    %376 = vmatpush1.msra.mxu0 0.0
    %377 = vmatprep.subr.mxu0 0.0
    %378 = vmatpush1.msra.mxu0 0.0
    %379 = vmatprep.mubr.f32.mxu0 0.0
    %380 = vmatmul.mubr.f32.gmra.mrb[0].mxu0 %v313
    %v381 = vpop.f32.mrb[0].mxu0
    %v382 = vadd.f32 0.0, %v381
    %v383 = vpop.f32.mrb[0].mxu0
    %384 = vdwg.mxu0
    %v385 = vadd.f32 %v175, %v382
    %v386 = vxor.u32 %v385, 2147483648
    %v387 = vmul.f32 %v386, 1.442695
    %v388 = vpow.pop %v387
    %v389 = vadd.f32 %v388, 1.0
    %v390 = vrcp.pop %v389
    %v391 = vmul.f32 1.0, %v390
    %v392 = vtanh.pop %v385
    %v393 = vmul.f32 %v391, %v303
    %395 = vrot.lane.b32.xlu0 %v392, 64
    %v396 = vpop.permute.xlu0 %395
    %v398 = vmul.f32 %v391, %v396
    %400 = vrot.lane.b32.xlu0 %v398, 32
    %v401 = vpop.permute.xlu0 %400
    %v403 = vadd.f32 %v393, %v401
    %v404 = vtanh.pop %v403
    %406 = vrot.lane.b32.xlu0 %v404, 64
    %v407 = vpop.permute.xlu0 %406
    %v409 = vmul.f32 %v391, %v407
    %v410 = vmax.f32 %v309, %v409
    %412 = vrot.lane.b32.xlu0 %v409, 32
    %v413 = vpop.permute.xlu0 %412
    %v414 = vsel %vm78, %v413, 0
    %416 = vmatprep.subr.mxu0 0.0
    %417 = vmatpush1.msra.mxu0 %v208
    %418 = vmatprep.subr.mxu0 0.0
    %419 = vmatpush1.msra.mxu0 %v209
    %420 = vmatprep.subr.mxu0 0.0
    %421 = vmatpush1.msra.mxu0 %v210
    %422 = vmatprep.subr.mxu0 0.0
    %423 = vmatpush1.msra.mxu0 %v211
    %424 = vmatprep.subr.mxu0 0.0
    %425 = vmatpush1.msra.mxu0 0.0
    %426 = vmatprep.subr.mxu0 0.0
    %427 = vmatpush1.msra.mxu0 0.0
    %428 = vmatprep.subr.mxu0 0.0
    %429 = vmatpush1.msra.mxu0 0.0
    %430 = vmatprep.subr.mxu0 0.0
    %431 = vmatpush1.msra.mxu0 0.0
    %432 = vmatprep.subr.mxu0 0.0
    %433 = vmatpush1.msra.mxu0 0.0
    %434 = vmatprep.subr.mxu0 0.0
    %435 = vmatpush1.msra.mxu0 0.0
    %436 = vmatprep.subr.mxu0 0.0
    %437 = vmatpush1.msra.mxu0 0.0
    %438 = vmatprep.subr.mxu0 0.0
    %439 = vmatpush1.msra.mxu0 0.0
    %440 = vmatprep.subr.mxu0 0.0
    %441 = vmatpush1.msra.mxu0 0.0
    %442 = vmatprep.subr.mxu0 0.0
    %443 = vmatpush1.msra.mxu0 0.0
    %444 = vmatprep.subr.mxu0 0.0
    %445 = vmatpush1.msra.mxu0 0.0
    %446 = vmatprep.subr.mxu0 0.0
    %447 = vmatpush1.msra.mxu0 0.0
    %448 = vmatprep.subr.mxu0 0.0
    %449 = vmatpush1.msra.mxu0 0.0
    %450 = vmatprep.subr.mxu0 0.0
    %451 = vmatpush1.msra.mxu0 0.0
    %452 = vmatprep.subr.mxu0 0.0
    %453 = vmatpush1.msra.mxu0 0.0
    %454 = vmatprep.subr.mxu0 0.0
    %455 = vmatpush1.msra.mxu0 0.0
    %456 = vmatprep.subr.mxu0 0.0
    %457 = vmatpush1.msra.mxu0 0.0
    %458 = vmatprep.subr.mxu0 0.0
    %459 = vmatpush1.msra.mxu0 0.0
    %460 = vmatprep.subr.mxu0 0.0
    %461 = vmatpush1.msra.mxu0 0.0
    %462 = vmatprep.subr.mxu0 0.0
    %463 = vmatpush1.msra.mxu0 0.0
    %464 = vmatprep.subr.mxu0 0.0
    %465 = vmatpush1.msra.mxu0 0.0
    %466 = vmatprep.subr.mxu0 0.0
    %467 = vmatpush1.msra.mxu0 0.0
    %468 = vmatprep.subr.mxu0 0.0
    %469 = vmatpush1.msra.mxu0 0.0
    %470 = vmatprep.subr.mxu0 0.0
    %471 = vmatpush1.msra.mxu0 0.0
    %472 = vmatprep.subr.mxu0 0.0
    %473 = vmatpush1.msra.mxu0 0.0
    %474 = vmatprep.subr.mxu0 0.0
    %475 = vmatpush1.msra.mxu0 0.0
    %476 = vmatprep.subr.mxu0 0.0
    %477 = vmatpush1.msra.mxu0 0.0
    %478 = vmatprep.subr.mxu0 0.0
    %479 = vmatpush1.msra.mxu0 0.0
    %480 = vmatprep.mubr.f32.mxu0 0.0
    %481 = vmatmul.mubr.f32.gmra.mrb[0].mxu0 %v414
    %v482 = vpop.f32.mrb[0].mxu0
    %v483 = vadd.f32 0.0, %v482
    %v484 = vpop.f32.mrb[0].mxu0
    %485 = vdwg.mxu0
    %v486 = vadd.f32 %v180, %v483
    %v487 = vxor.u32 %v486, 2147483648
    %v488 = vmul.f32 %v487, 1.442695
    %v489 = vpow.pop %v488
    %v490 = vadd.f32 %v489, 1.0
    %v491 = vrcp.pop %v490
    %v492 = vmul.f32 1.0, %v491
    %v493 = vtanh.pop %v486
    %v494 = vmul.f32 %v492, %v403
    %496 = vrot.lane.b32.xlu0 %v493, 64
    %v497 = vpop.permute.xlu0 %496
    %v499 = vmul.f32 %v492, %v497
    %501 = vrot.lane.b32.xlu0 %v499, 32
    %v502 = vpop.permute.xlu0 %501
    %v504 = vadd.f32 %v494, %v502
    %v505 = vtanh.pop %v504
    %507 = vrot.lane.b32.xlu0 %v505, 64
    %v508 = vpop.permute.xlu0 %507
    %v510 = vmul.f32 %v492, %v508
    %v511 = vmax.f32 %v410, %v510
    %513 = vrot.lane.b32.xlu0 %v510, 32
    %v514 = vpop.permute.xlu0 %513
    %v515 = vsel %vm78, %v514, 0
    %517 = vmatprep.subr.mxu0 0.0
    %518 = vmatpush1.msra.mxu0 %v208
    %519 = vmatprep.subr.mxu0 0.0
    %520 = vmatpush1.msra.mxu0 %v209
    %521 = vmatprep.subr.mxu0 0.0
    %522 = vmatpush1.msra.mxu0 %v210
    %523 = vmatprep.subr.mxu0 0.0
    %524 = vmatpush1.msra.mxu0 %v211
    %525 = vmatprep.subr.mxu0 0.0
    %526 = vmatpush1.msra.mxu0 0.0
    %527 = vmatprep.subr.mxu0 0.0
    %528 = vmatpush1.msra.mxu0 0.0
    %529 = vmatprep.subr.mxu0 0.0
    %530 = vmatpush1.msra.mxu0 0.0
    %531 = vmatprep.subr.mxu0 0.0
    %532 = vmatpush1.msra.mxu0 0.0
    %533 = vmatprep.subr.mxu0 0.0
    %534 = vmatpush1.msra.mxu0 0.0
    %535 = vmatprep.subr.mxu0 0.0
    %536 = vmatpush1.msra.mxu0 0.0
    %537 = vmatprep.subr.mxu0 0.0
    %538 = vmatpush1.msra.mxu0 0.0
    %539 = vmatprep.subr.mxu0 0.0
    %540 = vmatpush1.msra.mxu0 0.0
    %541 = vmatprep.subr.mxu0 0.0
    %542 = vmatpush1.msra.mxu0 0.0
    %543 = vmatprep.subr.mxu0 0.0
    %544 = vmatpush1.msra.mxu0 0.0
    %545 = vmatprep.subr.mxu0 0.0
    %546 = vmatpush1.msra.mxu0 0.0
    %547 = vmatprep.subr.mxu0 0.0
    %548 = vmatpush1.msra.mxu0 0.0
    %549 = vmatprep.subr.mxu0 0.0
    %550 = vmatpush1.msra.mxu0 0.0
    %551 = vmatprep.subr.mxu0 0.0
    %552 = vmatpush1.msra.mxu0 0.0
    %553 = vmatprep.subr.mxu0 0.0
    %554 = vmatpush1.msra.mxu0 0.0
    %555 = vmatprep.subr.mxu0 0.0
    %556 = vmatpush1.msra.mxu0 0.0
    %557 = vmatprep.subr.mxu0 0.0
    %558 = vmatpush1.msra.mxu0 0.0
    %559 = vmatprep.subr.mxu0 0.0
    %560 = vmatpush1.msra.mxu0 0.0
    %561 = vmatprep.subr.mxu0 0.0
    %562 = vmatpush1.msra.mxu0 0.0
    %563 = vmatprep.subr.mxu0 0.0
    %564 = vmatpush1.msra.mxu0 0.0
    %565 = vmatprep.subr.mxu0 0.0
    %566 = vmatpush1.msra.mxu0 0.0
    %567 = vmatprep.subr.mxu0 0.0
    %568 = vmatpush1.msra.mxu0 0.0
    %569 = vmatprep.subr.mxu0 0.0
    %570 = vmatpush1.msra.mxu0 0.0
    %571 = vmatprep.subr.mxu0 0.0
    %572 = vmatpush1.msra.mxu0 0.0
    %573 = vmatprep.subr.mxu0 0.0
    %574 = vmatpush1.msra.mxu0 0.0
    %575 = vmatprep.subr.mxu0 0.0
    %576 = vmatpush1.msra.mxu0 0.0
    %577 = vmatprep.subr.mxu0 0.0
    %578 = vmatpush1.msra.mxu0 0.0
    %579 = vmatprep.subr.mxu0 0.0
    %580 = vmatpush1.msra.mxu0 0.0
    %581 = vmatprep.mubr.f32.mxu0 0.0
    %582 = vmatmul.mubr.f32.gmra.mrb[0].mxu0 %v515
    %v583 = vpop.f32.mrb[0].mxu0
    %v584 = vadd.f32 0.0, %v583
    %v585 = vpop.f32.mrb[0].mxu0
    %586 = vdwg.mxu0
    %v587 = vadd.f32 %v185, %v584
    %v588 = vxor.u32 %v587, 2147483648
    %v589 = vmul.f32 %v588, 1.442695
    %v590 = vpow.pop %v589
    %v591 = vadd.f32 %v590, 1.0
    %v592 = vrcp.pop %v591
    %v593 = vmul.f32 1.0, %v592
    %v594 = vtanh.pop %v587
    %v595 = vmul.f32 %v593, %v504
    %597 = vrot.lane.b32.xlu0 %v594, 64
    %v598 = vpop.permute.xlu0 %597
    %v600 = vmul.f32 %v593, %v598
    %602 = vrot.lane.b32.xlu0 %v600, 32
    %v603 = vpop.permute.xlu0 %602
    %v605 = vadd.f32 %v595, %v603
    %v606 = vtanh.pop %v605
    %608 = vrot.lane.b32.xlu0 %v606, 64
    %v609 = vpop.permute.xlu0 %608
    %v611 = vmul.f32 %v593, %v609
    %v612 = vmax.f32 %v511, %v611
    %614 = vrot.lane.b32.xlu0 %v611, 32
    %v615 = vpop.permute.xlu0 %614
    %v616 = vsel %vm78, %v615, 0
    %618 = vmatprep.subr.mxu0 0.0
    %619 = vmatpush1.msra.mxu0 %v208
    %620 = vmatprep.subr.mxu0 0.0
    %621 = vmatpush1.msra.mxu0 %v209
    %622 = vmatprep.subr.mxu0 0.0
    %623 = vmatpush1.msra.mxu0 %v210
    %624 = vmatprep.subr.mxu0 0.0
    %625 = vmatpush1.msra.mxu0 %v211
    %626 = vmatprep.subr.mxu0 0.0
    %627 = vmatpush1.msra.mxu0 0.0
    %628 = vmatprep.subr.mxu0 0.0
    %629 = vmatpush1.msra.mxu0 0.0
    %630 = vmatprep.subr.mxu0 0.0
    %631 = vmatpush1.msra.mxu0 0.0
    %632 = vmatprep.subr.mxu0 0.0
    %633 = vmatpush1.msra.mxu0 0.0
    %634 = vmatprep.subr.mxu0 0.0
    %635 = vmatpush1.msra.mxu0 0.0
    %636 = vmatprep.subr.mxu0 0.0
    %637 = vmatpush1.msra.mxu0 0.0
    %638 = vmatprep.subr.mxu0 0.0
    %639 = vmatpush1.msra.mxu0 0.0
    %640 = vmatprep.subr.mxu0 0.0
    %641 = vmatpush1.msra.mxu0 0.0
    %642 = vmatprep.subr.mxu0 0.0
    %643 = vmatpush1.msra.mxu0 0.0
    %644 = vmatprep.subr.mxu0 0.0
    %645 = vmatpush1.msra.mxu0 0.0
    %646 = vmatprep.subr.mxu0 0.0
    %647 = vmatpush1.msra.mxu0 0.0
    %648 = vmatprep.subr.mxu0 0.0
    %649 = vmatpush1.msra.mxu0 0.0
    %650 = vmatprep.subr.mxu0 0.0
    %651 = vmatpush1.msra.mxu0 0.0
    %652 = vmatprep.subr.mxu0 0.0
    %653 = vmatpush1.msra.mxu0 0.0
    %654 = vmatprep.subr.mxu0 0.0
    %655 = vmatpush1.msra.mxu0 0.0
    %656 = vmatprep.subr.mxu0 0.0
    %657 = vmatpush1.msra.mxu0 0.0
    %658 = vmatprep.subr.mxu0 0.0
    %659 = vmatpush1.msra.mxu0 0.0
    %660 = vmatprep.subr.mxu0 0.0
    %661 = vmatpush1.msra.mxu0 0.0
    %662 = vmatprep.subr.mxu0 0.0
    %663 = vmatpush1.msra.mxu0 0.0
    %664 = vmatprep.subr.mxu0 0.0
    %665 = vmatpush1.msra.mxu0 0.0
    %666 = vmatprep.subr.mxu0 0.0
    %667 = vmatpush1.msra.mxu0 0.0
    %668 = vmatprep.subr.mxu0 0.0
    %669 = vmatpush1.msra.mxu0 0.0
    %670 = vmatprep.subr.mxu0 0.0
    %671 = vmatpush1.msra.mxu0 0.0
    %672 = vmatprep.subr.mxu0 0.0
    %673 = vmatpush1.msra.mxu0 0.0
    %674 = vmatprep.subr.mxu0 0.0
    %675 = vmatpush1.msra.mxu0 0.0
    %676 = vmatprep.subr.mxu0 0.0
    %677 = vmatpush1.msra.mxu0 0.0
    %678 = vmatprep.subr.mxu0 0.0
    %679 = vmatpush1.msra.mxu0 0.0
    %680 = vmatprep.subr.mxu0 0.0
    %681 = vmatpush1.msra.mxu0 0.0
    %682 = vmatprep.mubr.f32.mxu0 0.0
    %683 = vmatmul.mubr.f32.gmra.mrb[0].mxu0 %v616
    %v684 = vpop.f32.mrb[0].mxu0
    %v685 = vadd.f32 0.0, %v684
    %v686 = vpop.f32.mrb[0].mxu0
    %687 = vdwg.mxu0
    %v688 = vadd.f32 %v190, %v685
    %v689 = vxor.u32 %v688, 2147483648
    %v690 = vmul.f32 %v689, 1.442695
    %v691 = vpow.pop %v690
    %v692 = vadd.f32 %v691, 1.0
    %v693 = vrcp.pop %v692
    %v694 = vmul.f32 1.0, %v693
    %v695 = vtanh.pop %v688
    %v696 = vmul.f32 %v694, %v605
    %698 = vrot.lane.b32.xlu0 %v695, 64
    %v699 = vpop.permute.xlu0 %698
    %v701 = vmul.f32 %v694, %v699
    %703 = vrot.lane.b32.xlu0 %v701, 32
    %v704 = vpop.permute.xlu0 %703
    %v706 = vadd.f32 %v696, %v704
    %v707 = vtanh.pop %v706
    %709 = vrot.lane.b32.xlu0 %v707, 64
    %v710 = vpop.permute.xlu0 %709
    %v712 = vmul.f32 %v694, %v710
    %v713 = vmax.f32 %v612, %v712
    %715 = vrot.lane.b32.xlu0 %v712, 32
    %v716 = vpop.permute.xlu0 %715
    %v717 = vsel %vm78, %v716, 0
    %719 = vmatprep.subr.mxu0 0.0
    %720 = vmatpush1.msra.mxu0 %v208
    %721 = vmatprep.subr.mxu0 0.0
    %722 = vmatpush1.msra.mxu0 %v209
    %723 = vmatprep.subr.mxu0 0.0
    %724 = vmatpush1.msra.mxu0 %v210
    %725 = vmatprep.subr.mxu0 0.0
    %726 = vmatpush1.msra.mxu0 %v211
    %727 = vmatprep.subr.mxu0 0.0
    %728 = vmatpush1.msra.mxu0 0.0
    %729 = vmatprep.subr.mxu0 0.0
    %730 = vmatpush1.msra.mxu0 0.0
    %731 = vmatprep.subr.mxu0 0.0
    %732 = vmatpush1.msra.mxu0 0.0
    %733 = vmatprep.subr.mxu0 0.0
    %734 = vmatpush1.msra.mxu0 0.0
    %735 = vmatprep.subr.mxu0 0.0
    %736 = vmatpush1.msra.mxu0 0.0
    %737 = vmatprep.subr.mxu0 0.0
    %738 = vmatpush1.msra.mxu0 0.0
    %739 = vmatprep.subr.mxu0 0.0
    %740 = vmatpush1.msra.mxu0 0.0
    %741 = vmatprep.subr.mxu0 0.0
    %742 = vmatpush1.msra.mxu0 0.0
    %743 = vmatprep.subr.mxu0 0.0
    %744 = vmatpush1.msra.mxu0 0.0
    %745 = vmatprep.subr.mxu0 0.0
    %746 = vmatpush1.msra.mxu0 0.0
    %747 = vmatprep.subr.mxu0 0.0
    %748 = vmatpush1.msra.mxu0 0.0
    %749 = vmatprep.subr.mxu0 0.0
    %750 = vmatpush1.msra.mxu0 0.0
    %751 = vmatprep.subr.mxu0 0.0
    %752 = vmatpush1.msra.mxu0 0.0
    %753 = vmatprep.subr.mxu0 0.0
    %754 = vmatpush1.msra.mxu0 0.0
    %755 = vmatprep.subr.mxu0 0.0
    %756 = vmatpush1.msra.mxu0 0.0
    %757 = vmatprep.subr.mxu0 0.0
    %758 = vmatpush1.msra.mxu0 0.0
    %759 = vmatprep.subr.mxu0 0.0
    %760 = vmatpush1.msra.mxu0 0.0
    %761 = vmatprep.subr.mxu0 0.0
    %762 = vmatpush1.msra.mxu0 0.0
    %763 = vmatprep.subr.mxu0 0.0
    %764 = vmatpush1.msra.mxu0 0.0
    %765 = vmatprep.subr.mxu0 0.0
    %766 = vmatpush1.msra.mxu0 0.0
    %767 = vmatprep.subr.mxu0 0.0
    %768 = vmatpush1.msra.mxu0 0.0
    %769 = vmatprep.subr.mxu0 0.0
    %770 = vmatpush1.msra.mxu0 0.0
    %771 = vmatprep.subr.mxu0 0.0
    %772 = vmatpush1.msra.mxu0 0.0
    %773 = vmatprep.subr.mxu0 0.0
    %774 = vmatpush1.msra.mxu0 0.0
    %775 = vmatprep.subr.mxu0 0.0
    %776 = vmatpush1.msra.mxu0 0.0
    %777 = vmatprep.subr.mxu0 0.0
    %778 = vmatpush1.msra.mxu0 0.0
    %779 = vmatprep.subr.mxu0 0.0
    %780 = vmatpush1.msra.mxu0 0.0
    %781 = vmatprep.subr.mxu0 0.0
    %782 = vmatpush1.msra.mxu0 0.0
    %783 = vmatprep.mubr.f32.mxu0 0.0
    %784 = vmatmul.mubr.f32.gmra.mrb[0].mxu0 %v717
    %v785 = vpop.f32.mrb[0].mxu0
    %v786 = vadd.f32 0.0, %v785
    %v787 = vpop.f32.mrb[0].mxu0
    %788 = vdwg.mxu0
    %v789 = vadd.f32 %v195, %v786
    %v790 = vxor.u32 %v789, 2147483648
    %v791 = vmul.f32 %v790, 1.442695
    %v792 = vpow.pop %v791
    %v793 = vadd.f32 %v792, 1.0
    %v794 = vrcp.pop %v793
    %v795 = vmul.f32 1.0, %v794
    %v796 = vtanh.pop %v789
    %v797 = vmul.f32 %v795, %v706
    %799 = vrot.lane.b32.xlu0 %v796, 64
    %v800 = vpop.permute.xlu0 %799
    %v802 = vmul.f32 %v795, %v800
    %804 = vrot.lane.b32.xlu0 %v802, 32
    %v805 = vpop.permute.xlu0 %804
    %v807 = vadd.f32 %v797, %v805
    %v808 = vtanh.pop %v807
    %810 = vrot.lane.b32.xlu0 %v808, 64
    %v811 = vpop.permute.xlu0 %810
    %v813 = vmul.f32 %v795, %v811
    %v814 = vmax.f32 %v713, %v813
    %816 = vrot.lane.b32.xlu0 %v813, 32
    %v817 = vpop.permute.xlu0 %816
    %v818 = vsel %vm78, %v817, 0
    %820 = vmatprep.subr.mxu0 0.0
    %821 = vmatpush1.msra.mxu0 %v208
    %822 = vmatprep.subr.mxu0 0.0
    %823 = vmatpush1.msra.mxu0 %v209
    %824 = vmatprep.subr.mxu0 0.0
    %825 = vmatpush1.msra.mxu0 %v210
    %826 = vmatprep.subr.mxu0 0.0
    %827 = vmatpush1.msra.mxu0 %v211
    %828 = vmatprep.subr.mxu0 0.0
    %829 = vmatpush1.msra.mxu0 0.0
    %830 = vmatprep.subr.mxu0 0.0
    %831 = vmatpush1.msra.mxu0 0.0
    %832 = vmatprep.subr.mxu0 0.0
    %833 = vmatpush1.msra.mxu0 0.0
    %834 = vmatprep.subr.mxu0 0.0
    %835 = vmatpush1.msra.mxu0 0.0
    %836 = vmatprep.subr.mxu0 0.0
    %837 = vmatpush1.msra.mxu0 0.0
    %838 = vmatprep.subr.mxu0 0.0
    %839 = vmatpush1.msra.mxu0 0.0
    %840 = vmatprep.subr.mxu0 0.0
    %841 = vmatpush1.msra.mxu0 0.0
    %842 = vmatprep.subr.mxu0 0.0
    %843 = vmatpush1.msra.mxu0 0.0
    %844 = vmatprep.subr.mxu0 0.0
    %845 = vmatpush1.msra.mxu0 0.0
    %846 = vmatprep.subr.mxu0 0.0
    %847 = vmatpush1.msra.mxu0 0.0
    %848 = vmatprep.subr.mxu0 0.0
    %849 = vmatpush1.msra.mxu0 0.0
    %850 = vmatprep.subr.mxu0 0.0
    %851 = vmatpush1.msra.mxu0 0.0
    %852 = vmatprep.subr.mxu0 0.0
    %853 = vmatpush1.msra.mxu0 0.0
    %854 = vmatprep.subr.mxu0 0.0
    %855 = vmatpush1.msra.mxu0 0.0
    %856 = vmatprep.subr.mxu0 0.0
    %857 = vmatpush1.msra.mxu0 0.0
    %858 = vmatprep.subr.mxu0 0.0
    %859 = vmatpush1.msra.mxu0 0.0
    %860 = vmatprep.subr.mxu0 0.0
    %861 = vmatpush1.msra.mxu0 0.0
    %862 = vmatprep.subr.mxu0 0.0
    %863 = vmatpush1.msra.mxu0 0.0
    %864 = vmatprep.subr.mxu0 0.0
    %865 = vmatpush1.msra.mxu0 0.0
    %866 = vmatprep.subr.mxu0 0.0
    %867 = vmatpush1.msra.mxu0 0.0
    %868 = vmatprep.subr.mxu0 0.0
    %869 = vmatpush1.msra.mxu0 0.0
    %870 = vmatprep.subr.mxu0 0.0
    %871 = vmatpush1.msra.mxu0 0.0
    %872 = vmatprep.subr.mxu0 0.0
    %873 = vmatpush1.msra.mxu0 0.0
    %874 = vmatprep.subr.mxu0 0.0
    %875 = vmatpush1.msra.mxu0 0.0
    %876 = vmatprep.subr.mxu0 0.0
    %877 = vmatpush1.msra.mxu0 0.0
    %878 = vmatprep.subr.mxu0 0.0
    %879 = vmatpush1.msra.mxu0 0.0
    %880 = vmatprep.subr.mxu0 0.0
    %881 = vmatpush1.msra.mxu0 0.0
    %882 = vmatprep.subr.mxu0 0.0
    %883 = vmatpush1.msra.mxu0 0.0
    %884 = vmatprep.mubr.f32.mxu0 0.0
    %885 = vmatmul.mubr.f32.gmra.mrb[0].mxu0 %v818
    %v886 = vpop.f32.mrb[0].mxu0
    %v887 = vadd.f32 0.0, %v886
    %v888 = vpop.f32.mrb[0].mxu0
    %889 = vdwg.mxu0
    %v890 = vadd.f32 %v200, %v887
    %v891 = vxor.u32 %v890, 2147483648
    %v892 = vmul.f32 %v891, 1.442695
    %v893 = vpow.pop %v892
    %v894 = vadd.f32 %v893, 1.0
    %v895 = vrcp.pop %v894
    %v896 = vmul.f32 1.0, %v895
    %v897 = vtanh.pop %v890
    %v898 = vmul.f32 %v896, %v807
    %900 = vrot.lane.b32.xlu0 %v897, 64
    %v901 = vpop.permute.xlu0 %900
    %v903 = vmul.f32 %v896, %v901
    %905 = vrot.lane.b32.xlu0 %v903, 32
    %v906 = vpop.permute.xlu0 %905
    %v908 = vadd.f32 %v898, %v906
    %v909 = vtanh.pop %v908
    %911 = vrot.lane.b32.xlu0 %v909, 64
    %v912 = vpop.permute.xlu0 %911
    %v914 = vmul.f32 %v896, %v912
    %v915 = vmax.f32 %v814, %v914
    %917 = vrot.lane.b32.xlu0 %v914, 32
    %v918 = vpop.permute.xlu0 %917
    %v919 = vsel %vm78, %v918, 0
    %921 = vmatprep.subr.mxu0 0.0
    %922 = vmatpush1.msra.mxu0 %v208
    %923 = vmatprep.subr.mxu0 0.0
    %924 = vmatpush1.msra.mxu0 %v209
    %925 = vmatprep.subr.mxu0 0.0
    %926 = vmatpush1.msra.mxu0 %v210
    %927 = vmatprep.subr.mxu0 0.0
    %928 = vmatpush1.msra.mxu0 %v211
    %929 = vmatprep.subr.mxu0 0.0
    %930 = vmatpush1.msra.mxu0 0.0
    %931 = vmatprep.subr.mxu0 0.0
    %932 = vmatpush1.msra.mxu0 0.0
    %933 = vmatprep.subr.mxu0 0.0
    %934 = vmatpush1.msra.mxu0 0.0
    %935 = vmatprep.subr.mxu0 0.0
    %936 = vmatpush1.msra.mxu0 0.0
    %937 = vmatprep.subr.mxu0 0.0
    %938 = vmatpush1.msra.mxu0 0.0
    %939 = vmatprep.subr.mxu0 0.0
    %940 = vmatpush1.msra.mxu0 0.0
    %941 = vmatprep.subr.mxu0 0.0
    %942 = vmatpush1.msra.mxu0 0.0
    %943 = vmatprep.subr.mxu0 0.0
    %944 = vmatpush1.msra.mxu0 0.0
    %945 = vmatprep.subr.mxu0 0.0
    %946 = vmatpush1.msra.mxu0 0.0
    %947 = vmatprep.subr.mxu0 0.0
    %948 = vmatpush1.msra.mxu0 0.0
    %949 = vmatprep.subr.mxu0 0.0
    %950 = vmatpush1.msra.mxu0 0.0
    %951 = vmatprep.subr.mxu0 0.0
    %952 = vmatpush1.msra.mxu0 0.0
    %953 = vmatprep.subr.mxu0 0.0
    %954 = vmatpush1.msra.mxu0 0.0
    %955 = vmatprep.subr.mxu0 0.0
    %956 = vmatpush1.msra.mxu0 0.0
    %957 = vmatprep.subr.mxu0 0.0
    %958 = vmatpush1.msra.mxu0 0.0
    %959 = vmatprep.subr.mxu0 0.0
    %960 = vmatpush1.msra.mxu0 0.0
    %961 = vmatprep.subr.mxu0 0.0
    %962 = vmatpush1.msra.mxu0 0.0
    %963 = vmatprep.subr.mxu0 0.0
    %964 = vmatpush1.msra.mxu0 0.0
    %965 = vmatprep.subr.mxu0 0.0
    %966 = vmatpush1.msra.mxu0 0.0
    %967 = vmatprep.subr.mxu0 0.0
    %968 = vmatpush1.msra.mxu0 0.0
    %969 = vmatprep.subr.mxu0 0.0
    %970 = vmatpush1.msra.mxu0 0.0
    %971 = vmatprep.subr.mxu0 0.0
    %972 = vmatpush1.msra.mxu0 0.0
    %973 = vmatprep.subr.mxu0 0.0
    %974 = vmatpush1.msra.mxu0 0.0
    %975 = vmatprep.subr.mxu0 0.0
    %976 = vmatpush1.msra.mxu0 0.0
    %977 = vmatprep.subr.mxu0 0.0
    %978 = vmatpush1.msra.mxu0 0.0
    %979 = vmatprep.subr.mxu0 0.0
    %980 = vmatpush1.msra.mxu0 0.0
    %981 = vmatprep.subr.mxu0 0.0
    %982 = vmatpush1.msra.mxu0 0.0
    %983 = vmatprep.subr.mxu0 0.0
    %984 = vmatpush1.msra.mxu0 0.0
    %985 = vmatprep.mubr.f32.mxu0 0.0
    %986 = vmatmul.mubr.f32.gmra.mrb[0].mxu0 %v919
    %v987 = vpop.f32.mrb[0].mxu0
    %v988 = vadd.f32 0.0, %v987
    %v989 = vpop.f32.mrb[0].mxu0
    %990 = vdwg.mxu0
    %v991 = vadd.f32 %v205, %v988
    %v992 = vxor.u32 %v991, 2147483648
    %v993 = vmul.f32 %v992, 1.442695
    %v994 = vpow.pop %v993
    %v995 = vadd.f32 %v994, 1.0
    %v996 = vrcp.pop %v995
    %v997 = vmul.f32 1.0, %v996
    %v998 = vtanh.pop %v991
    %v999 = vmul.f32 %v997, %v908
    %1001 = vrot.lane.b32.xlu0 %v998, 64
    %v1002 = vpop.permute.xlu0 %1001
    %v1004 = vmul.f32 %v997, %v1002
    %1006 = vrot.lane.b32.xlu0 %v1004, 32
    %v1007 = vpop.permute.xlu0 %1006
    %v1009 = vadd.f32 %v999, %v1007
    %v1010 = vtanh.pop %v1009
    %1012 = vrot.lane.b32.xlu0 %v1010, 64
    %v1013 = vpop.permute.xlu0 %1012
    %v1015 = vmul.f32 %v997, %v1013
    %v1016 = vmax.f32 %v915, %v1015
    %1018 = vrot.lane.b32.xlu0 %v1016, 32
    %v1019 = vpop.permute.xlu0 %1018
    %1021 = vst.msk [vmem:[#allocation8] sm:$0xff] %vm78, %v1019
    // Predicated region
    $region30: #{tpu_custom_call.1} parent=1 // pred_check
      _
    $region31: #{tpu_custom_call.1} parent=1 // pred_check_branch
      %1023 = sbr.rel (0) target = $region33
    $region32: #{tpu_custom_call.1} parent=1 // pred_region
      %s1025 = ssub.s32 128, 128
      %1026 = vsyncadd [#allocation4], %s1025
      %s1028 = sshll.u32 [#allocation8], 4
      %s1029 = int_to_ptr.vmem [resolvable:$true] %s1028
      %1031 = dma.vmem_to_hbm [thread:$0]  %s1029, 128, %s4, [#allocation4]
    $region33: #{tpu_custom_call.1} parent=1 // pred_fallthru
      _
    // Predicated region
    $region34: #{tpu_custom_call.1} parent=1 // pred_check
      _
    $region35: #{tpu_custom_call.1} parent=1 // pred_check_branch
      %1033 = sbr.rel (0) target = $region37
    $region36: #{tpu_custom_call.1} parent=1 // pred_region
      %1034 = dma.done [#allocation4], 128
    $region37: #{tpu_custom_call.1} parent=1 // pred_fallthru
      _
    %1035 = vsyncpa [#allocation3], 1
    %1036 = vsyncpa [#allocation6], 1
    %1037 = vsyncpa [#allocation4], 1

</llo_original>
